<compile_context>
chip_gen: v6e
topology: v6e:2x2x1
jax: 0.10.0
libtpu: 0.0.40
codegen_flags: <defaults>
</compile_context>

<pallas_src>
import jax
import jax.numpy as jnp
from jax import lax
from jax.experimental import pallas as pl
from jax.experimental.pallas import tpu as pltpu

LEAKY_SLOPE = 0.1


def _leaky(x):
    return jnp.where(x > 0, x, LEAKY_SLOPE * x)


def _round_up(x, m):
    return ((x + m - 1) // m) * m


# ------------- fused (space-to-depth + 1x1 conv + leaky) pointwise kernel ---
def _pointwise_kernel(x_ref, w_ref, b_ref, o_ref):
    acc = jnp.dot(x_ref[...], w_ref[...], preferred_element_type=jnp.float32)
    o_ref[...] = _leaky(acc + b_ref[...]).astype(o_ref.dtype)


def conv1x1_s2d_leaky(x2, w_big, b_big, *, tm=512):
    """Fused 1x1 conv + LeakyReLU on pre-reorganized rows.

    x2:    (M, K)       rows are final output pixels, K = 4*Cin (2x2 block, ch)
    w_big: (K, Cout)    block-diagonal replication of the 1x1 weight
    b_big: (Cout,)
    -> (M, Cout) float32, Cout = 256 (lane-dense output)
    """
    M, K = x2.shape
    Cout = w_big.shape[-1]
    tm = min(tm, M)
    x2 = x2.astype(jnp.bfloat16)
    w_big = w_big.astype(jnp.bfloat16)
    return pl.pallas_call(
        _pointwise_kernel,
        out_shape=jax.ShapeDtypeStruct((M, Cout), jnp.float32),
        grid_spec=pltpu.PrefetchScalarGridSpec(
            num_scalar_prefetch=0,
            grid=(pl.cdiv(M, tm),),
            in_specs=[
                pl.BlockSpec((tm, K), lambda i: (i, 0)),
                pl.BlockSpec((K, Cout), lambda i: (0, 0)),
                pl.BlockSpec((1, Cout), lambda i: (0, 0)),
            ],
            out_specs=pl.BlockSpec((tm, Cout), lambda i: (i, 0)),
        ),
        compiler_params=pltpu.CompilerParams(
            dimension_semantics=("parallel",),
            vmem_limit_bytes=32 * 1024 * 1024,   # explicit (v5e default is 16 MiB)
        ),
    )(x2, w_big, b_big.reshape(1, Cout).astype(jnp.float32))


# ------------- 3x3 conv (pad=1) + leaky relu, row-tiled with halo DMA -------
def _make_conv3x3_kernel(offsets, tm, pad_rows, fetch_rows, use_mask):
    n_taps = len(offsets)

    def kernel(*refs):
        if use_mask:
            x_hbm, w_ref, b_ref, mask_ref, o_ref, buf, sem = refs
        else:
            x_hbm, w_ref, b_ref, o_ref, buf, sem = refs
            mask_ref = None

        m = pl.program_id(1)
        num_m = pl.num_programs(1)
        slot = m % 2

        # --- manual double-buffered fetch of the halo'd activation row-tile.
        # The chain restarts at m == 0 of every channel tile, so the outer
        # (channel) grid axis can be split across TensorCores safely.
        @pl.when(m == 0)
        def _():
            pltpu.make_async_copy(
                x_hbm.at[pl.ds(0, fetch_rows), :], buf.at[0], sem.at[0]
            ).start()

        # Wait for the tile this step computes on.
        pltpu.make_async_copy(
            x_hbm.at[pl.ds(0, fetch_rows), :], buf.at[slot], sem.at[slot]
        ).wait()

        # Prefetch the next row-tile into the other slot while we compute.
        @pl.when(m + 1 < num_m)
        def _():
            pltpu.make_async_copy(
                x_hbm.at[pl.ds((m + 1) * tm, fetch_rows), :],
                buf.at[1 - slot],
                sem.at[1 - slot],
            ).start()

        def compute(s):
            # 9 static row-shift MXU matmuls, back to back (v7x can keep the
            # accumulation in the MRB).  Acc is initialised by the first tap:
            # no zeros materialisation / extra read-modify-write pass.
            acc = jnp.dot(buf[s, pl.ds(pad_rows + offsets[0], tm), :],
                          w_ref[0], preferred_element_type=jnp.float32)
            for t in range(1, n_taps):
                xs = buf[s, pl.ds(pad_rows + offsets[t], tm), :]
                acc = acc + jnp.dot(xs, w_ref[t],
                                    preferred_element_type=jnp.float32)
            y = _leaky(acc + b_ref[...])
            if use_mask:
                y = y * mask_ref[...]
            o_ref[...] = y.astype(o_ref.dtype)

        # Unrolled over the two buffer slots so every compute-side index is
        # static (keeps the MXU tap loop on the guaranteed-lowerable path).
        @pl.when(slot == 0)
        def _():
            compute(0)

        @pl.when(slot == 1)
        def _():
            compute(1)

    return kernel


def conv3x3_leaky_flat(x_flat, w_hwio, b, wp, *, mask=None, tm=512, tn=256,
                       out_dtype=jnp.float32):
    """3x3 conv (zero padding already present as rows) + LeakyReLU, row-tiled.

    x_flat: (M, Cin) -- zero-padded images flattened row-major over
            (batch, padded-row, padded-col); padded positions must be zero.
    w_hwio: (3, 3, Cin, Cout)
    b:      (Cout,)
    mask:   optional (M, 1) f32, 1 for interior pixels, 0 for padded rows.
            Pass it when the output feeds another row-shift conv (its padded
            rows must be exactly zero); omit when padded rows are discarded.
    wp:     padded image width Wp (turns a (kh, kw) tap into a row offset)
    -> (M, Cout) out_dtype
    """
    m_rows, cin = x_flat.shape
    cout = w_hwio.shape[-1]
    tn = min(tn, cout)
    pad_rows = wp + 1                     # largest |row offset| of a 3x3 tap
    offsets = tuple((kh - 1) * wp + (kw - 1)
                    for kh in range(3) for kw in range(3))

    # Row-tile size: bounded (VMEM independent of batch*spatial), sublane
    # aligned, never bigger than the (rounded-up) problem size.
    tm = max(8, min(_round_up(tm, 8), _round_up(m_rows, 8)))
    num_m = pl.cdiv(m_rows, tm)
    m_pad = num_m * tm
    fetch_rows = tm + 2 * pad_rows        # row-tile + halo
    num_n = pl.cdiv(cout, tn)

    # Zero-extend so every halo'd window stays in bounds (DMAs are bounds
    # checked) and out-of-image taps read exact zeros.
    x_ext = jnp.pad(x_flat.astype(jnp.bfloat16),
                    ((pad_rows, pad_rows + (m_pad - m_rows)), (0, 0)))
    w = w_hwio.reshape(9, cin, cout).astype(jnp.bfloat16)
    b2 = b.reshape(1, cout).astype(jnp.float32)

    use_mask = mask is not None
    in_specs = [
        # Raw HBM ref: overlapping halo windows are not expressible with
        # Blocked index maps, so the kernel DMAs them itself.
        pl.BlockSpec(memory_space=pl.ANY),
        # Weight slab changes only with the outer channel axis -> streamed
        # from HBM once; 3-deep buffering hides its DMA behind matmuls.
        pl.BlockSpec((9, cin, tn), lambda n, m: (0, 0, n),
                     pipeline_mode=pl.Buffered(3)),
        pl.BlockSpec((1, tn), lambda n, m: (0, n)),
    ]
    args = [x_ext, w, b2]
    if use_mask:
        mask_p = jnp.pad(mask.astype(jnp.float32),
                         ((0, m_pad - m_rows), (0, 0)))
        in_specs.append(pl.BlockSpec((tm, 1), lambda n, m: (m, 0)))
        args.append(mask_p)
        # TODO(synk): generate this interior mask in-kernel from
        #             broadcasted_iota (needs vector int div/mod by Wp) and
        #             drop the lane-padded mask DMA entirely.

    kernel = _make_conv3x3_kernel(offsets, tm, pad_rows, fetch_rows, use_mask)
    out = pl.pallas_call(
        kernel,
        out_shape=jax.ShapeDtypeStruct((m_pad, cout), out_dtype),
        grid_spec=pltpu.PrefetchScalarGridSpec(
            num_scalar_prefetch=0,
            grid=(num_n, num_m),          # channel tiles outer: each weight
                                          # slab leaves HBM exactly once
            in_specs=in_specs,
            out_specs=pl.BlockSpec((tm, tn), lambda n, m: (m, n)),
            scratch_shapes=[
                pltpu.VMEM((2, fetch_rows, cin), jnp.bfloat16),
                pltpu.SemaphoreType.DMA((2,)),
            ],
        ),
        compiler_params=pltpu.CompilerParams(
            dimension_semantics=("parallel", "arbitrary"),
            # Under v7x's 64 MiB physical VMEM; above v5e's 16 MiB default.
            vmem_limit_bytes=48 * 1024 * 1024,
        ),
    )(*args)
    return out if m_pad == m_rows else out[:m_rows]


# ------------- full forward --------------------------------------------------
def passthrough_forward(C4_nchw, C5_nchw, params, *, stride=2):
    # ---- P4 branch: 2x2 space-to-depth folded into the 1x1 conv ----
    B, c4, H4, W4 = C4_nchw.shape
    assert H4 % stride == 0 and W4 % stride == 0
    hd, wd = H4 // stride, W4 // stride
    g = stride * stride
    x4 = C4_nchw.reshape(B, c4, hd, stride, wd, stride)
    x4 = jnp.transpose(x4, (0, 2, 4, 3, 5, 1))       # (B, hd, wd, j, l, C)
    x4 = x4.reshape(B * hd * wd, g * c4)
    # Block-diagonal weight (constant-folded under jit).  75% of this tiny
    # matmul multiplies structural zeros, but it buys a lane-dense 256-wide
    # output written with unmasked stores.
    w_big = jnp.kron(jnp.eye(g, dtype=params["w1"].dtype), params["w1"])
    b_big = jnp.tile(params["b1"], g)
    P4 = conv1x1_s2d_leaky(x4, w_big, b_big)         # (B*hd*wd, 4*64) f32

    # ---- P5 branch: two 3x3 convs in padded-flat layout ----
    Bc, c5, H5, W5 = C5_nchw.shape
    assert (hd, wd) == (H5, W5) and Bc == B          # required for the concat
    Hp, Wp = H5 + 2, W5 + 2
    x5 = jnp.transpose(C5_nchw, (0, 2, 3, 1))        # NHWC
    x5 = jnp.pad(x5, ((0, 0), (1, 1), (1, 1), (0, 0)))
    x5 = x5.reshape(Bc * Hp * Wp, c5)

    # Interior mask: zeroes the FIRST conv's padded rows so the second conv's
    # row-shift taps read exact zeros across image borders.  (Do not remove.)
    mask2d = jnp.zeros((Hp, Wp), jnp.float32).at[1:H5 + 1, 1:W5 + 1].set(1.0)
    mask = jnp.broadcast_to(mask2d.reshape(1, Hp * Wp), (Bc, Hp * Wp))
    mask = mask.reshape(Bc * Hp * Wp, 1)

    # TODO(synk): optionally fuse the two 3x3 convs into one kernel (h1 held in
    #             VMEM scratch per row-tile) to skip its HBM round trip.
    h1 = conv3x3_leaky_flat(x5, params["w2a"], params["b2a"], Wp, mask=mask,
                            out_dtype=jnp.bfloat16)  # padded rows zeroed
    # Second conv: its padded-border rows are discarded by the interior slice
    # below, so no mask multiply / mask DMA is needed here.
    P5p = conv3x3_leaky_flat(h1, params["w2b"], params["b2b"], Wp,
                             out_dtype=jnp.float32)
    P5 = P5p.reshape(Bc, Hp, Wp, -1)[:, 1:H5 + 1, 1:W5 + 1, :]
    P5 = P5.reshape(Bc * H5 * W5, -1)

    # ---- concat + single transpose back to NCHW ----
    out = jnp.concatenate([P4, P5], axis=-1)         # (B*hd*wd, 256 + 1024)
    out = out.reshape(B, hd, wd, -1)
    return jnp.transpose(out, (0, 3, 1, 2))


# ------------- pure-JAX reference for validation -----------------------------
def _space_to_depth_torch(p4_nchw, s=2):
    # Exactly reproduces the chain of view/transpose in the PyTorch forward:
    # out[b, (j*s+l)*c + ch, i, k] = P4[b, ch, i*s+j, k*s+l]
    b, c, h, w = p4_nchw.shape
    hd, wd = h // s, w // s
    x = p4_nchw.reshape(b, c, hd, s, wd, s)
    x = jnp.transpose(x, (0, 3, 5, 1, 2, 4))         # (b, j, l, c, hd, wd)
    return x.reshape(b, s * s * c, hd, wd)


def _ref_conv(x_nchw, w_hwio, b, padding):
    w_oihw = jnp.transpose(w_hwio, (3, 2, 0, 1))
    y = lax.conv_general_dilated(
        x_nchw, w_oihw, window_strides=(1, 1), padding=padding,
        dimension_numbers=("NCHW", "OIHW", "NCHW"),
        precision=lax.Precision.HIGHEST)
    return _leaky(y + b[None, :, None, None])


def reference_forward(C4, C5, params):
    w1 = params["w1"].reshape(1, 1, *params["w1"].shape)
    P4 = _ref_conv(C4, w1, params["b1"], "VALID")
    h1 = _ref_conv(C5, params["w2a"], params["b2a"], "SAME")
    P5 = _ref_conv(h1, params["w2b"], params["b2b"], "SAME")
    P4 = _space_to_depth_torch(P4, s=2)
    return jnp.concatenate([P4, P5], axis=1)


if __name__ == "__main__":
    key = jax.random.PRNGKey(0)
    in_channels = (4, 8)                 # (C4 channels, C5 channels)
    B, H4, W4 = 2, 16, 16                # C4 spatial is 2x C5 spatial
    H5, W5 = 8, 8
    ks = iter(jax.random.split(key, 8))

    C4 = jax.random.normal(next(ks), (B, in_channels[0], H4, W4), jnp.float32)
    C5 = jax.random.normal(next(ks), (B, in_channels[1], H5, W5), jnp.float32)

    params = dict(
        w1=0.10 * jax.random.normal(next(ks), (in_channels[0], 64), jnp.float32),
        b1=0.10 * jax.random.normal(next(ks), (64,), jnp.float32),
        w2a=0.05 * jax.random.normal(next(ks), (3, 3, in_channels[1], 1024), jnp.float32),
        b2a=0.10 * jax.random.normal(next(ks), (1024,), jnp.float32),
        w2b=0.02 * jax.random.normal(next(ks), (3, 3, 1024, 1024), jnp.float32),
        b2b=0.10 * jax.random.normal(next(ks), (1024,), jnp.float32),
    )

    out = jax.block_until_ready(passthrough_forward(C4, C5, params))
    assert out.shape == (B, 4 * 64 + 1024, H5, W5), out.shape

    ref = jax.block_until_ready(reference_forward(C4, C5, params))
    max_err = float(jnp.max(jnp.abs(out - ref)))
    assert jnp.allclose(out, ref, atol=2e-2, rtol=2e-2), f"max abs err {max_err}"

    print("KERNEL_OK")
</pallas_src>

<mosaic_0001>
module attributes {stable_mosaic.version = 11 : i64} {
  func.func @_pointwise_kernel(%arg0: i32, %arg1: memref<128x16xbf16, #tpu.memory_space<vmem>>, %arg2: memref<16x256xbf16, #tpu.memory_space<vmem>>, %arg3: memref<1x256xf32, #tpu.memory_space<vmem>>, %arg4: memref<128x256xf32, #tpu.memory_space<vmem>>) attributes {dimension_semantics = [#tpu.dimension_semantics<parallel>], iteration_bounds = array<i64: 1>, scalar_prefetch = 0 : i64, scratch_operands = 0 : i64, tpu.core_type = #tpu.core_type<tc>, window_params = [{transform_indices = @transform_0, window_bounds = array<i64: 128, 16>}, {pipeline_mode = #tpu.pipeline_mode<synchronous>, transform_indices = @transform_1, window_bounds = array<i64: 16, 256>}, {pipeline_mode = #tpu.pipeline_mode<synchronous>, transform_indices = @transform_2, window_bounds = array<i64: 1, 256>}, {transform_indices = @transform_3, window_bounds = array<i64: 128, 256>}]} {
    %c0 = arith.constant 0 : index
    %c0_0 = arith.constant 0 : index
    %0 = vector.load %arg1[%c0, %c0_0] : memref<128x16xbf16, #tpu.memory_space<vmem>>, vector<128x16xbf16>
    %c0_1 = arith.constant 0 : index
    %c0_2 = arith.constant 0 : index
    %1 = vector.load %arg2[%c0_1, %c0_2] : memref<16x256xbf16, #tpu.memory_space<vmem>>, vector<16x256xbf16>
    %cst = arith.constant dense<0.000000e+00> : vector<128x256xf32>
    %2 = tpu.matmul %0, %1, %cst {dimension_numbers = #tpu.dot_dimension_numbers<[1], [0], [0], [1], [0, 0, 1, 1], [], []>} : vector<128x16xbf16>, vector<16x256xbf16>, vector<128x256xf32> -> vector<128x256xf32>
    %c0_3 = arith.constant 0 : index
    %c0_4 = arith.constant 0 : index
    %3 = vector.load %arg3[%c0_3, %c0_4] : memref<1x256xf32, #tpu.memory_space<vmem>>, vector<1x256xf32>
    %4 = vector.broadcast %3 : vector<1x256xf32> to vector<128x256xf32>
    %5 = arith.addf %2, %4 : vector<128x256xf32>
    %cst_5 = arith.constant 0.000000e+00 : f32
    %6 = vector.broadcast %cst_5 : f32 to vector<128x256xf32>
    %7 = arith.cmpf ogt, %5, %6 : vector<128x256xf32>
    %cst_6 = arith.constant 1.000000e-01 : f32
    %8 = vector.broadcast %cst_6 : f32 to vector<128x256xf32>
    %9 = arith.mulf %8, %5 : vector<128x256xf32>
    %10 = arith.select %7, %5, %9 : vector<128x256xi1>, vector<128x256xf32>
    %c0_7 = arith.constant 0 : index
    %c0_8 = arith.constant 0 : index
    %11 = vector.load %arg4[%c0_7, %c0_8] : memref<128x256xf32, #tpu.memory_space<vmem>>, vector<128x256xf32>
    tpu.vector_store %arg4[%c0_7, %c0_8], %10 {strides = array<i32>} : memref<128x256xf32, #tpu.memory_space<vmem>>, vector<128x256xf32>,
    return
  }
  func.func @transform_0(%arg0: i32) -> (i32, i32) {
    %c0_i32 = arith.constant 0 : i32
    %c0_i32_0 = arith.constant 0 : i32
    return %arg0, %c0_i32 : i32, i32
  }
  func.func @transform_1(%arg0: i32) -> (i32, i32) {
    %c0_i32 = arith.constant 0 : i32
    %c0_i32_0 = arith.constant 0 : i32
    %c0_i32_1 = arith.constant 0 : i32
    return %c0_i32, %c0_i32_0 : i32, i32
  }
  func.func @transform_2(%arg0: i32) -> (i32, i32) {
    %c0_i32 = arith.constant 0 : i32
    %c0_i32_0 = arith.constant 0 : i32
    %c0_i32_1 = arith.constant 0 : i32
    return %c0_i32, %c0_i32_0 : i32, i32
  }
  func.func @transform_3(%arg0: i32) -> (i32, i32) {
    %c0_i32 = arith.constant 0 : i32
    %c0_i32_0 = arith.constant 0 : i32
    return %arg0, %c0_i32 : i32, i32
  }
}

</mosaic_0001>

<llo_original>
// kernel: tpu_custom_call.1
$region0: #{tpu_custom_call.1}
  #allocation0 [shape = 'u32[]', space=smem, size = 0x4, offset = 0x4, fixed_abs, tag = 'smem constant byte address 0x4 - core index']
  #allocation1 [shape = 'u32[144,128]{1,0:T(1,128)}', space=vmem, size = 0x12000, scoped, tag = 'internal scratch']
  %s0 = inlined_call_operand.vmem [shape: bf16[128,16], index: 0, kind: input, shape index: {}]
  %s1 = inlined_call_operand.vmem [shape: bf16[16,256], index: 1, kind: input, shape index: {}]
  %s2 = inlined_call_operand.vmem [shape: f32[1,256], index: 2, kind: input, shape index: {}]
  %s3 = inlined_call_operand.hbm [shape: f32[128,256], index: 3, kind: output, shape index: {}]
  %s4 = sld [smem:[#allocation0]]
  $region22: #{tpu_custom_call.1} parent=0
    _
  %s6 = ssub.s32 1, %s4
  %s7 = scalar_select 0, %s6, %s4
  $region1: #{tpu_custom_call.1} parent=0
    #allocation2 [shape = 'u8[131072]{0}', space=vmem, size = 0x20000, scoped, tag = 'output window, operand 0, single buffered']
    #allocation3 [shape = 's32[1]{0}', space=sflag, size = 0x4, scoped, tag = 'scoped memory for tpu_custom_call.1']
    %8 = vsyncpa [#allocation3], 0
    // Predicated region
    $region2: #{tpu_custom_call.1} parent=1 // pred_check
      _
    $region3: #{tpu_custom_call.1} parent=1 // pred_check_branch
      %10 = sbr.rel (0) target = $region5
    $region4: #{tpu_custom_call.1} parent=1 // pred_region
      _
    $region5: #{tpu_custom_call.1} parent=1 // pred_fallthru
      _
    // Predicated region
    $region6: #{tpu_custom_call.1} parent=1 // pred_check
      _
    $region7: #{tpu_custom_call.1} parent=1 // pred_check_branch
      %12 = sbr.rel (0) target = $region9
    $region8: #{tpu_custom_call.1} parent=1 // pred_region
      _
    $region9: #{tpu_custom_call.1} parent=1 // pred_fallthru
      _
    // Predicated region
    $region10: #{tpu_custom_call.1} parent=1 // pred_check
      _
    $region11: #{tpu_custom_call.1} parent=1 // pred_check_branch
      %14 = sbr.rel (0) target = $region13
    $region12: #{tpu_custom_call.1} parent=1 // pred_region
      _
    $region13: #{tpu_custom_call.1} parent=1 // pred_fallthru
      _
    %v16 = vld [vmem:[%s0] sm:$0xf]
    %v17 = vld [vmem:[%s0 + $0x4] sm:$0xf]
    %v18 = vld [vmem:[%s0 + $0x8] sm:$0xf]
    %v19 = vld [vmem:[%s0 + $0xc] sm:$0xf]
    %v20 = vld [vmem:[%s0 + $0x10] sm:$0xf]
    %v21 = vld [vmem:[%s0 + $0x14] sm:$0xf]
    %v22 = vld [vmem:[%s0 + $0x18] sm:$0xf]
    %v23 = vld [vmem:[%s0 + $0x1c] sm:$0xf]
    %v24 = vld [vmem:[%s0 + $0x20] sm:$0xf]
    %v25 = vld [vmem:[%s0 + $0x24] sm:$0xf]
    %v26 = vld [vmem:[%s0 + $0x28] sm:$0xf]
    %v27 = vld [vmem:[%s0 + $0x2c] sm:$0xf]
    %v28 = vld [vmem:[%s0 + $0x30] sm:$0xf]
    %v29 = vld [vmem:[%s0 + $0x34] sm:$0xf]
    %v30 = vld [vmem:[%s0 + $0x38] sm:$0xf]
    %v31 = vld [vmem:[%s0 + $0x3c] sm:$0xf]
    %v32 = vld [vmem:[%s1] sm:$0xff]
    %v33 = vld [vmem:[%s1 + $0x8] sm:$0xff]
    %v34 = vld [vmem:[%s2] sm:$0x3]
    %v36 = vlaneseq
    %v37 = vshrl.u32 %v36, 7
    %v38 = vsub.s32 0, %v37
    %v39 = vrot.slane %v34, %v38
    %v40 = vlaneseq
    %v41 = vshrl.u32 %v40, 7
    %v42 = vsub.s32 1, %v41
    %v43 = vrot.slane %v34, %v42
    %v62 = vunpack.c.l.b16 %v16
    %v63 = vunpack.c.l.b16 %v17
    %v64 = vunpack.c.l.b16 %v18
    %v65 = vunpack.c.l.b16 %v19
    %v66 = vunpack.c.l.b16 %v20
    %v67 = vunpack.c.l.b16 %v21
    %v68 = vunpack.c.l.b16 %v22
    %v69 = vunpack.c.l.b16 %v23
    %v70 = vunpack.c.l.b16 %v24
    %v71 = vunpack.c.l.b16 %v25
    %v72 = vunpack.c.l.b16 %v26
    %v73 = vunpack.c.l.b16 %v27
    %v74 = vunpack.c.l.b16 %v28
    %v75 = vunpack.c.l.b16 %v29
    %v76 = vunpack.c.l.b16 %v30
    %v77 = vunpack.c.l.b16 %v31
    %v78 = vpack.c.b16 %v63, %v62
    %v79 = vpack.c.b16 %v65, %v64
    %v80 = vpack.c.b16 %v67, %v66
    %v81 = vpack.c.b16 %v69, %v68
    %v82 = vpack.c.b16 %v71, %v70
    %v83 = vpack.c.b16 %v73, %v72
    %v84 = vpack.c.b16 %v75, %v74
    %v85 = vpack.c.b16 %v77, %v76
    %v88 = vunpack.c.l.b16 %v32
    %v89 = vunpack.c.h.b16 %v32
    %v90 = vunpack.c.l.b16 %v33
    %v91 = vunpack.c.h.b16 %v33
    %v92 = vpack.c.b16 %v90, %v88
    %v93 = vpack.c.b16 %v91, %v89
    %vm96 = vcmask 130048
    %v98 = vsel %vm96, %v78, 0
    %v101 = vsel %vm96, %v79, 0
    %v104 = vsel %vm96, %v80, 0
    %v107 = vsel %vm96, %v81, 0
    %v110 = vsel %vm96, %v82, 0
    %v113 = vsel %vm96, %v83, 0
    %v116 = vsel %vm96, %v84, 0
    %v119 = vsel %vm96, %v85, 0
    %121 = vmatprep.subr.bf16.mxu0 0
    %122 = vmatpush1.bf16.msra.mxu0 0
    %123 = vmatprep.subr.bf16.mxu0 0
    %124 = vmatpush1.bf16.msra.mxu0 0
    %125 = vmatprep.subr.bf16.mxu0 0
    %126 = vmatpush1.bf16.msra.mxu0 0
    %127 = vmatprep.subr.bf16.mxu0 0
    %128 = vmatpush1.bf16.msra.mxu0 0
    %129 = vmatprep.subr.bf16.mxu0 0
    %130 = vmatpush1.bf16.msra.mxu0 0
    %131 = vmatprep.subr.bf16.mxu0 0
    %132 = vmatpush1.bf16.msra.mxu0 0
    %133 = vmatprep.subr.bf16.mxu0 0
    %134 = vmatpush1.bf16.msra.mxu0 0
    %135 = vmatprep.subr.bf16.mxu0 %v93
    %136 = vmatpush1.bf16.msra.mxu0 %v92
    %137 = vmatprep.subr.bf16.mxu0 0
    %138 = vmatpush2.bf16.msra.mxu0 0
    %139 = vmatprep.subr.bf16.mxu0 0
    %140 = vmatpush2.bf16.msra.mxu0 0
    %141 = vmatprep.subr.bf16.mxu0 0
    %142 = vmatpush2.bf16.msra.mxu0 0
    %143 = vmatprep.subr.bf16.mxu0 0
    %144 = vmatpush2.bf16.msra.mxu0 0
    %145 = vmatprep.subr.bf16.mxu0 0
    %146 = vmatpush2.bf16.msra.mxu0 0
    %147 = vmatprep.subr.bf16.mxu0 0
    %148 = vmatpush2.bf16.msra.mxu0 0
    %149 = vmatprep.subr.bf16.mxu0 0
    %150 = vmatpush2.bf16.msra.mxu0 0
    %151 = vmatprep.subr.bf16.mxu0 0
    %152 = vmatpush2.bf16.msra.mxu0 0
    %153 = vmatprep.mubr.bf16.mxu0 0
    %154 = vmatmul.mubr.bf16.gmra.mxu0 %v98
    %v155 = vpop.f32.mrf.mxu0
    %v156 = vadd.f32 %v39, %v155
    %v157 = vpop.f32.mrf.mxu0
    %v158 = vadd.f32 %v43, %v157
    %v159 = vpop.f32.mrf.mxu0
    %v160 = vadd.f32 %v39, %v159
    %v161 = vpop.f32.mrf.mxu0
    %v162 = vadd.f32 %v43, %v161
    %163 = vmatprep.mubr.bf16.mxu0 0
    %164 = vmatmul.mubr.bf16.gmra.mxu0 %v101
    %v165 = vpop.f32.mrf.mxu0
    %v166 = vadd.f32 %v39, %v165
    %v167 = vpop.f32.mrf.mxu0
    %v168 = vadd.f32 %v43, %v167
    %v169 = vpop.f32.mrf.mxu0
    %v170 = vadd.f32 %v39, %v169
    %v171 = vpop.f32.mrf.mxu0
    %v172 = vadd.f32 %v43, %v171
    %173 = vmatprep.mubr.bf16.mxu0 0
    %174 = vmatmul.mubr.bf16.gmra.mxu0 %v104
    %v175 = vpop.f32.mrf.mxu0
    %v176 = vadd.f32 %v39, %v175
    %v177 = vpop.f32.mrf.mxu0
    %v178 = vadd.f32 %v43, %v177
    %v179 = vpop.f32.mrf.mxu0
    %v180 = vadd.f32 %v39, %v179
    %v181 = vpop.f32.mrf.mxu0
    %v182 = vadd.f32 %v43, %v181
    %183 = vmatprep.mubr.bf16.mxu0 0
    %184 = vmatmul.mubr.bf16.gmra.mxu0 %v107
    %v185 = vpop.f32.mrf.mxu0
    %v186 = vadd.f32 %v39, %v185
    %v187 = vpop.f32.mrf.mxu0
    %v188 = vadd.f32 %v43, %v187
    %v189 = vpop.f32.mrf.mxu0
    %v190 = vadd.f32 %v39, %v189
    %v191 = vpop.f32.mrf.mxu0
    %v192 = vadd.f32 %v43, %v191
    %193 = vmatprep.mubr.bf16.mxu0 0
    %194 = vmatmul.mubr.bf16.gmra.mxu0 %v110
    %v195 = vpop.f32.mrf.mxu0
    %v196 = vadd.f32 %v39, %v195
    %v197 = vpop.f32.mrf.mxu0
    %v198 = vadd.f32 %v43, %v197
    %v199 = vpop.f32.mrf.mxu0
    %v200 = vadd.f32 %v39, %v199
    %v201 = vpop.f32.mrf.mxu0
    %v202 = vadd.f32 %v43, %v201
    %203 = vmatprep.mubr.bf16.mxu0 0
    %204 = vmatmul.mubr.bf16.gmra.mxu0 %v113
    %v205 = vpop.f32.mrf.mxu0
    %v206 = vadd.f32 %v39, %v205
    %v207 = vpop.f32.mrf.mxu0
    %v208 = vadd.f32 %v43, %v207
    %v209 = vpop.f32.mrf.mxu0
    %v210 = vadd.f32 %v39, %v209
    %v211 = vpop.f32.mrf.mxu0
    %v212 = vadd.f32 %v43, %v211
    %213 = vmatprep.mubr.bf16.mxu0 0
    %214 = vmatmul.mubr.bf16.gmra.mxu0 %v116
    %v215 = vpop.f32.mrf.mxu0
    %v216 = vadd.f32 %v39, %v215
    %v217 = vpop.f32.mrf.mxu0
    %v218 = vadd.f32 %v43, %v217
    %v219 = vpop.f32.mrf.mxu0
    %v220 = vadd.f32 %v39, %v219
    %v221 = vpop.f32.mrf.mxu0
    %v222 = vadd.f32 %v43, %v221
    %223 = vmatprep.mubr.bf16.mxu0 0
    %224 = vmatmul.mubr.bf16.gmra.mxu0 %v119
    %v225 = vpop.f32.mrf.mxu0
    %v226 = vadd.f32 %v39, %v225
    %v227 = vpop.f32.mrf.mxu0
    %v228 = vadd.f32 %v43, %v227
    %v229 = vpop.f32.mrf.mxu0
    %v230 = vadd.f32 %v39, %v229
    %v231 = vpop.f32.mrf.mxu0
    %v232 = vadd.f32 %v43, %v231
    %233 = vdwg.mxu0
    %vm234 = vcmp.gt.f32.partialorder %v156, 0.0
    %vm235 = vcmp.gt.f32.partialorder %v158, 0.0
    %vm236 = vcmp.gt.f32.partialorder %v160, 0.0
    %vm237 = vcmp.gt.f32.partialorder %v162, 0.0
    %vm238 = vcmp.gt.f32.partialorder %v166, 0.0
    %vm239 = vcmp.gt.f32.partialorder %v168, 0.0
    %vm240 = vcmp.gt.f32.partialorder %v170, 0.0
    %vm241 = vcmp.gt.f32.partialorder %v172, 0.0
    %vm242 = vcmp.gt.f32.partialorder %v176, 0.0
    %vm243 = vcmp.gt.f32.partialorder %v178, 0.0
    %vm244 = vcmp.gt.f32.partialorder %v180, 0.0
    %vm245 = vcmp.gt.f32.partialorder %v182, 0.0
    %vm246 = vcmp.gt.f32.partialorder %v186, 0.0
    %vm247 = vcmp.gt.f32.partialorder %v188, 0.0
    %vm248 = vcmp.gt.f32.partialorder %v190, 0.0
    %vm249 = vcmp.gt.f32.partialorder %v192, 0.0
    %vm250 = vcmp.gt.f32.partialorder %v196, 0.0
    %vm251 = vcmp.gt.f32.partialorder %v198, 0.0
    %vm252 = vcmp.gt.f32.partialorder %v200, 0.0
    %vm253 = vcmp.gt.f32.partialorder %v202, 0.0
    %vm254 = vcmp.gt.f32.partialorder %v206, 0.0
    %vm255 = vcmp.gt.f32.partialorder %v208, 0.0
    %vm256 = vcmp.gt.f32.partialorder %v210, 0.0
    %vm257 = vcmp.gt.f32.partialorder %v212, 0.0
    %vm258 = vcmp.gt.f32.partialorder %v216, 0.0
    %vm259 = vcmp.gt.f32.partialorder %v218, 0.0
    %vm260 = vcmp.gt.f32.partialorder %v220, 0.0
    %vm261 = vcmp.gt.f32.partialorder %v222, 0.0
    %vm262 = vcmp.gt.f32.partialorder %v226, 0.0
    %vm263 = vcmp.gt.f32.partialorder %v228, 0.0
    %vm264 = vcmp.gt.f32.partialorder %v230, 0.0
    %vm265 = vcmp.gt.f32.partialorder %v232, 0.0
    %v266 = vmul.f32 %v156, 0.1
    %v267 = vmul.f32 %v158, 0.1
    %v268 = vmul.f32 %v160, 0.1
    %v269 = vmul.f32 %v162, 0.1
    %v270 = vmul.f32 %v166, 0.1
    %v271 = vmul.f32 %v168, 0.1
    %v272 = vmul.f32 %v170, 0.1
    %v273 = vmul.f32 %v172, 0.1
    %v274 = vmul.f32 %v176, 0.1
    %v275 = vmul.f32 %v178, 0.1
    %v276 = vmul.f32 %v180, 0.1
    %v277 = vmul.f32 %v182, 0.1
    %v278 = vmul.f32 %v186, 0.1
    %v279 = vmul.f32 %v188, 0.1
    %v280 = vmul.f32 %v190, 0.1
    %v281 = vmul.f32 %v192, 0.1
    %v282 = vmul.f32 %v196, 0.1
    %v283 = vmul.f32 %v198, 0.1
    %v284 = vmul.f32 %v200, 0.1
    %v285 = vmul.f32 %v202, 0.1
    %v286 = vmul.f32 %v206, 0.1
    %v287 = vmul.f32 %v208, 0.1
    %v288 = vmul.f32 %v210, 0.1
    %v289 = vmul.f32 %v212, 0.1
    %v290 = vmul.f32 %v216, 0.1
    %v291 = vmul.f32 %v218, 0.1
    %v292 = vmul.f32 %v220, 0.1
    %v293 = vmul.f32 %v222, 0.1
    %v294 = vmul.f32 %v226, 0.1
    %v295 = vmul.f32 %v228, 0.1
    %v296 = vmul.f32 %v230, 0.1
    %v297 = vmul.f32 %v232, 0.1
    %v298 = vsel %vm234, %v156, %v266
    %v299 = vsel %vm235, %v158, %v267
    %v300 = vsel %vm236, %v160, %v268
    %v301 = vsel %vm237, %v162, %v269
    %v302 = vsel %vm238, %v166, %v270
    %v303 = vsel %vm239, %v168, %v271
    %v304 = vsel %vm240, %v170, %v272
    %v305 = vsel %vm241, %v172, %v273
    %v306 = vsel %vm242, %v176, %v274
    %v307 = vsel %vm243, %v178, %v275
    %v308 = vsel %vm244, %v180, %v276
    %v309 = vsel %vm245, %v182, %v277
    %v310 = vsel %vm246, %v186, %v278
    %v311 = vsel %vm247, %v188, %v279
    %v312 = vsel %vm248, %v190, %v280
    %v313 = vsel %vm249, %v192, %v281
    %v314 = vsel %vm250, %v196, %v282
    %v315 = vsel %vm251, %v198, %v283
    %v316 = vsel %vm252, %v200, %v284
    %v317 = vsel %vm253, %v202, %v285
    %v318 = vsel %vm254, %v206, %v286
    %v319 = vsel %vm255, %v208, %v287
    %v320 = vsel %vm256, %v210, %v288
    %v321 = vsel %vm257, %v212, %v289
    %v322 = vsel %vm258, %v216, %v290
    %v323 = vsel %vm259, %v218, %v291
    %v324 = vsel %vm260, %v220, %v292
    %v325 = vsel %vm261, %v222, %v293
    %v326 = vsel %vm262, %v226, %v294
    %v327 = vsel %vm263, %v228, %v295
    %v328 = vsel %vm264, %v230, %v296
    %v329 = vsel %vm265, %v232, %v297
    %330 = vst [vmem:[#allocation2] sm:$0xff] %v298
    %331 = vst [vmem:[#allocation2 + $0x8] sm:$0xff] %v299
    %332 = vst [vmem:[#allocation2 + $0x10] sm:$0xff] %v300
    %333 = vst [vmem:[#allocation2 + $0x18] sm:$0xff] %v301
    %334 = vst [vmem:[#allocation2 + $0x20] sm:$0xff] %v302
    %335 = vst [vmem:[#allocation2 + $0x28] sm:$0xff] %v303
    %336 = vst [vmem:[#allocation2 + $0x30] sm:$0xff] %v304
    %337 = vst [vmem:[#allocation2 + $0x38] sm:$0xff] %v305
    %338 = vst [vmem:[#allocation2 + $0x40] sm:$0xff] %v306
    %339 = vst [vmem:[#allocation2 + $0x48] sm:$0xff] %v307
    %340 = vst [vmem:[#allocation2 + $0x50] sm:$0xff] %v308
    %341 = vst [vmem:[#allocation2 + $0x58] sm:$0xff] %v309
    %342 = vst [vmem:[#allocation2 + $0x60] sm:$0xff] %v310
    %343 = vst [vmem:[#allocation2 + $0x68] sm:$0xff] %v311
    %344 = vst [vmem:[#allocation2 + $0x70] sm:$0xff] %v312
    %345 = vst [vmem:[#allocation2 + $0x78] sm:$0xff] %v313
    %346 = vst [vmem:[#allocation2 + $0x80] sm:$0xff] %v314
    %347 = vst [vmem:[#allocation2 + $0x88] sm:$0xff] %v315
    %348 = vst [vmem:[#allocation2 + $0x90] sm:$0xff] %v316
    %349 = vst [vmem:[#allocation2 + $0x98] sm:$0xff] %v317
    %350 = vst [vmem:[#allocation2 + $0xa0] sm:$0xff] %v318
    %351 = vst [vmem:[#allocation2 + $0xa8] sm:$0xff] %v319
    %352 = vst [vmem:[#allocation2 + $0xb0] sm:$0xff] %v320
    %353 = vst [vmem:[#allocation2 + $0xb8] sm:$0xff] %v321
    %354 = vst [vmem:[#allocation2 + $0xc0] sm:$0xff] %v322
    %355 = vst [vmem:[#allocation2 + $0xc8] sm:$0xff] %v323
    %356 = vst [vmem:[#allocation2 + $0xd0] sm:$0xff] %v324
    %357 = vst [vmem:[#allocation2 + $0xd8] sm:$0xff] %v325
    %358 = vst [vmem:[#allocation2 + $0xe0] sm:$0xff] %v326
    %359 = vst [vmem:[#allocation2 + $0xe8] sm:$0xff] %v327
    %360 = vst [vmem:[#allocation2 + $0xf0] sm:$0xff] %v328
    %361 = vst [vmem:[#allocation2 + $0xf8] sm:$0xff] %v329
    // Predicated region
    $region14: #{tpu_custom_call.1} parent=1 // pred_check
      _
    $region15: #{tpu_custom_call.1} parent=1 // pred_check_branch
      %363 = sbr.rel (0) target = $region17
    $region16: #{tpu_custom_call.1} parent=1 // pred_region
      %s365 = ssub.s32 4096, 4096
      %366 = vsyncadd [#allocation3], %s365
      %s367 = sshll.u32 [#allocation2], 4
      %s368 = int_to_ptr.vmem [resolvable:$true] %s367
      %373 = dma.vmem_to_hbm [thread:$0]  %s368, 4096, %s3, [#allocation3], 256, 256, 16
    $region17: #{tpu_custom_call.1} parent=1 // pred_fallthru
      _
    // Predicated region
    $region18: #{tpu_custom_call.1} parent=1 // pred_check
      _
    $region19: #{tpu_custom_call.1} parent=1 // pred_check_branch
      %375 = sbr.rel (0) target = $region21
    $region20: #{tpu_custom_call.1} parent=1 // pred_region
      %376 = dma.done [#allocation3], 4096
    $region21: #{tpu_custom_call.1} parent=1 // pred_fallthru
      _
    %377 = vsyncpa [#allocation3], 1

</llo_original>
